<compile_context>
chip_gen: v7x
topology: tpu7x:2x2x1
jax: 0.10.0
libtpu: 0.0.40
codegen_flags: <defaults>
</compile_context>

<pallas_src>
import functools

import jax
import jax.numpy as jnp
import numpy as np
from jax import lax
from jax.experimental import pallas as pl
from jax.experimental.pallas import tpu as pltpu


# ----------------------------- Pallas kernels -------------------------------

def _conv_relu_pool(p_ref, w_ref, b_ref, pool_ref):
    # p_ref:    [CKK, B*HW]  im2col patches, batch*spatial on the lane axis
    # w_ref:    [Cout, CKK]  conv weight flattened channel-major (C, KH, KW)
    # b_ref:    [Cout, 1]    conv bias
    # pool_ref: [B*HW, B]    per-batch average-pool matrix (1/HW in own column)
    y = jnp.dot(w_ref[...], p_ref[...], preferred_element_type=jnp.float32)
    y = jnp.maximum(y + b_ref[...], 0.0)                       # bias + ReLU
    # global average pool as an MXU matmul (batch mask + 1/HW scale folded in)
    return jnp.dot(y, pool_ref[...], preferred_element_type=jnp.float32)  # [Cout, B]


def fused_tabular_kernel(p_ref, w_ref, b_ref, pool_ref,
                         data_ref, fwc_ref, fwt_ref, fb_ref, out_ref):
    # data_ref: [1, B]    tabular feature (transposed)
    # fwc_ref:  [1, Cout] fc weight acting on the CNN features
    # fwt_ref:  [1, 1]    fc weight acting on the tabular feature
    # fb_ref:   [1, 1]    fc bias
    # out_ref:  [1, B]
    feats = _conv_relu_pool(p_ref, w_ref, b_ref, pool_ref)                    # [Cout, B]
    out = jnp.dot(fwc_ref[...], feats, preferred_element_type=jnp.float32)    # [1, B]
    out_ref[...] = out + fwt_ref[...] * data_ref[...] + fb_ref[...]


def conv_relu_pool_kernel(p_ref, w_ref, b_ref, pool_ref, feat_ref):
    feat_ref[...] = _conv_relu_pool(p_ref, w_ref, b_ref, pool_ref)            # [Cout, B]


# ------------------------------- Wrapper -------------------------------------

def _vmem_specs(n):
    return [pl.BlockSpec(memory_space=pltpu.MemorySpace.VMEM) for _ in range(n)]


@functools.partial(jax.jit, static_argnames=("tabular",))
def my_model_forward(image, data, params, tabular=True):
    """Equivalent of MyModel.forward with cnn = Conv2d(C->8,k3,p1)+ReLU+GAP."""
    conv_w = params["conv_w"]                     # [Cout, Cin, KH, KW] (PyTorch layout)
    conv_b = params["conv_b"]                     # [Cout]
    B, C, H, W = image.shape
    Cout, _, KH, KW = conv_w.shape
    HW, CKK, N = H * W, C * KH * KW, B * H * W

    # --- glue: im2col patches, presented lane-dense as [CKK, B*HW] ------------
    x = image.astype(jnp.float32)
    p = lax.conv_general_dilated_patches(x, (KH, KW), (1, 1), "SAME")  # [B, CKK, H, W]
    # conv_general_dilated_patches orders the feature axis channel-major
    # (c, kh, kw), which matches conv_w.reshape(Cout, C*KH*KW) below.
    p = p.reshape(B, CKK, HW).transpose(1, 0, 2).reshape(CKK, N)

    w2 = conv_w.reshape(Cout, CKK).astype(jnp.float32)
    b2 = conv_b.reshape(Cout, 1).astype(jnp.float32)

    # Per-batch mean-pool matrix (trace-time constant).
    pool = np.zeros((N, B), np.float32)
    for b in range(B):
        pool[b * HW:(b + 1) * HW, b] = 1.0 / HW
    pool = jnp.asarray(pool)

    if tabular:
        fc_w = params["fc_w"].astype(jnp.float32)              # [1, Cout + 1]
        fc_b = params["fc_b"].astype(jnp.float32)              # [1]
        out = pl.pallas_call(
            fused_tabular_kernel,
            out_shape=jax.ShapeDtypeStruct((1, B), jnp.float32),
            in_specs=_vmem_specs(8),
            out_specs=pl.BlockSpec(memory_space=pltpu.MemorySpace.VMEM),
        )(p, w2, b2, pool,
          data.astype(jnp.float32).reshape(1, B),
          fc_w[:, :Cout], fc_w[:, Cout:Cout + 1], fc_b.reshape(1, 1))
        return out.reshape(B, 1)
    else:
        feats = pl.pallas_call(
            conv_relu_pool_kernel,
            out_shape=jax.ShapeDtypeStruct((Cout, B), jnp.float32),
            in_specs=_vmem_specs(4),
            out_specs=pl.BlockSpec(memory_space=pltpu.MemorySpace.VMEM),
        )(p, w2, b2, pool)
        return feats.T                                          # [B, Cout]


# ------------------------------ Param init -----------------------------------

def init_params(key, c_in=4, c_out=8, k=3):
    k1, k2, k3, k4 = jax.random.split(key, 4)
    # PyTorch layouts: Conv2d weight [Cout, Cin, KH, KW], Linear weight [out, in].
    conv_w = jax.random.normal(k1, (c_out, c_in, k, k), jnp.float32) * 0.1
    conv_b = jax.random.normal(k2, (c_out,), jnp.float32) * 0.1
    fc_w = jax.random.normal(k3, (1, c_out + 1), jnp.float32) * 0.1
    fc_b = jax.random.normal(k4, (1,), jnp.float32) * 0.1
    return {"conv_w": conv_w, "conv_b": conv_b, "fc_w": fc_w, "fc_b": fc_b}


# --------------------------------- Main ---------------------------------------

if __name__ == "__main__":
    key = jax.random.PRNGKey(0)
    kp, ki, kd = jax.random.split(key, 3)

    B, C, H, W = 2, 4, 16, 16
    params = init_params(kp, c_in=C, c_out=8, k=3)

    image = jax.random.normal(ki, (B, C, H, W), jnp.float32)   # NCHW
    data = jax.random.normal(kd, (B, 1), jnp.float32)          # tabular feature

    out = my_model_forward(image, data, params, tabular=True)
    out = jax.block_until_ready(out)
    assert out.shape == (B, 1), out.shape
    print("KERNEL_OK")
</pallas_src>

<mosaic_0001>
module attributes {stable_mosaic.version = 11 : i64} {
  func.func @fused_tabular_kernel(%arg0: memref<36x512xf32, #tpu.memory_space<vmem>>, %arg1: memref<8x36xf32, #tpu.memory_space<vmem>>, %arg2: memref<8x1xf32, #tpu.memory_space<vmem>>, %arg3: memref<512x2xf32, #tpu.memory_space<vmem>>, %arg4: memref<1x2xf32, #tpu.memory_space<vmem>>, %arg5: memref<1x8xf32, #tpu.memory_space<vmem>>, %arg6: memref<1x1xf32, #tpu.memory_space<vmem>>, %arg7: memref<1x1xf32, #tpu.memory_space<vmem>>, %arg8: memref<1x2xf32, #tpu.memory_space<vmem>>) attributes {dimension_semantics = [], scalar_prefetch = 0 : i64, scratch_operands = 0 : i64, tpu.core_type = #tpu.core_type<tc>} {
    %c0 = arith.constant 0 : index
    %c0_0 = arith.constant 0 : index
    %0 = vector.load %arg1[%c0, %c0_0] : memref<8x36xf32, #tpu.memory_space<vmem>>, vector<8x36xf32>
    %c0_1 = arith.constant 0 : index
    %c0_2 = arith.constant 0 : index
    %1 = vector.load %arg0[%c0_1, %c0_2] : memref<36x512xf32, #tpu.memory_space<vmem>>, vector<36x512xf32>
    %cst = arith.constant dense<0.000000e+00> : vector<8x512xf32>
    %2 = tpu.matmul %0, %1, %cst {dimension_numbers = #tpu.dot_dimension_numbers<[1], [0], [0], [1], [0, 0, 1, 1], [], []>} : vector<8x36xf32>, vector<36x512xf32>, vector<8x512xf32> -> vector<8x512xf32>
    %c0_3 = arith.constant 0 : index
    %c0_4 = arith.constant 0 : index
    %3 = vector.load %arg2[%c0_3, %c0_4] : memref<8x1xf32, #tpu.memory_space<vmem>>, vector<8x1xf32>
    %4 = vector.broadcast %3 : vector<8x1xf32> to vector<8x512xf32>
    %5 = arith.addf %2, %4 : vector<8x512xf32>
    %cst_5 = arith.constant 0.000000e+00 : f32
    %6 = vector.broadcast %cst_5 : f32 to vector<8x512xf32>
    %7 = arith.maximumf %5, %6 : vector<8x512xf32>
    %c0_6 = arith.constant 0 : index
    %c0_7 = arith.constant 0 : index
    %8 = vector.load %arg3[%c0_6, %c0_7] : memref<512x2xf32, #tpu.memory_space<vmem>>, vector<512x2xf32>
    %cst_8 = arith.constant dense<0.000000e+00> : vector<8x2xf32>
    %9 = tpu.matmul %7, %8, %cst_8 {dimension_numbers = #tpu.dot_dimension_numbers<[1], [0], [0], [1], [0, 0, 1, 1], [], []>} : vector<8x512xf32>, vector<512x2xf32>, vector<8x2xf32> -> vector<8x2xf32>
    %c0_9 = arith.constant 0 : index
    %c0_10 = arith.constant 0 : index
    %10 = vector.load %arg5[%c0_9, %c0_10] : memref<1x8xf32, #tpu.memory_space<vmem>>, vector<1x8xf32>
    %cst_11 = arith.constant dense<0.000000e+00> : vector<1x2xf32>
    %11 = tpu.matmul %10, %9, %cst_11 {dimension_numbers = #tpu.dot_dimension_numbers<[1], [0], [0], [1], [0, 0, 1, 1], [], []>} : vector<1x8xf32>, vector<8x2xf32>, vector<1x2xf32> -> vector<1x2xf32>
    %c0_12 = arith.constant 0 : index
    %c0_13 = arith.constant 0 : index
    %12 = vector.load %arg6[%c0_12, %c0_13] : memref<1x1xf32, #tpu.memory_space<vmem>>, vector<1x1xf32>
    %c0_14 = arith.constant 0 : index
    %c0_15 = arith.constant 0 : index
    %13 = vector.load %arg4[%c0_14, %c0_15] : memref<1x2xf32, #tpu.memory_space<vmem>>, vector<1x2xf32>
    %14 = vector.broadcast %12 : vector<1x1xf32> to vector<1x2xf32>
    %15 = arith.mulf %14, %13 : vector<1x2xf32>
    %16 = arith.addf %11, %15 : vector<1x2xf32>
    %c0_16 = arith.constant 0 : index
    %c0_17 = arith.constant 0 : index
    %17 = vector.load %arg7[%c0_16, %c0_17] : memref<1x1xf32, #tpu.memory_space<vmem>>, vector<1x1xf32>
    %18 = vector.broadcast %17 : vector<1x1xf32> to vector<1x2xf32>
    %19 = arith.addf %16, %18 : vector<1x2xf32>
    %c0_18 = arith.constant 0 : index
    %c0_19 = arith.constant 0 : index
    %20 = vector.load %arg8[%c0_18, %c0_19] : memref<1x2xf32, #tpu.memory_space<vmem>>, vector<1x2xf32>
    tpu.vector_store %arg8[%c0_18, %c0_19], %19 {strides = array<i32>} : memref<1x2xf32, #tpu.memory_space<vmem>>, vector<1x2xf32>,
    return
  }
}

</mosaic_0001>

<llo_original>
// kernel: my_model_forward.1
$region0: #{my_model_forward.1}
  #allocation0 [shape = 'u32[]', space=smem, size = 0x4, offset = 0x4, fixed_abs, tag = 'smem constant byte address 0x4 - core index']
  #allocation1 [shape = 'u32[144,128]{1,0:T(1,128)}', space=vmem, size = 0x12000, scoped, tag = 'internal scratch']
  #allocation2 [shape = 'f32[1,1]{1,0:T(1,128)S(1)}', space=vmem, size = 0x200, scoped, tag = 'scoped memory for my_model_forward.1']
  #allocation3 [shape = 'f32[1,1]{1,0:T(1,128)S(1)}', space=vmem, size = 0x200, scoped, tag = 'scoped memory for my_model_forward.1']
  %s0 = inlined_call_operand.vmem [shape: f32[36,512], index: 0, kind: input, shape index: {}]
  %s1 = inlined_call_operand.vmem [shape: f32[8,36], index: 1, kind: input, shape index: {}]
  %s2 = inlined_call_operand.vmem [shape: f32[8,1], index: 2, kind: input, shape index: {}]
  %s3 = inlined_call_operand.vmem [shape: f32[512,2], index: 3, kind: input, shape index: {}]
  %s4 = inlined_call_operand.vmem [shape: f32[1,2], index: 4, kind: input, shape index: {}]
  %s5 = inlined_call_operand.vmem [shape: f32[1,8], index: 5, kind: input, shape index: {}]
  %s6 = inlined_call_operand.<no memory space> [shape: f32[1,1], index: 6, kind: input, shape index: {}]
  %s7 = inlined_call_operand.<no memory space> [shape: f32[1,1], index: 7, kind: input, shape index: {}]
  %s8 = inlined_call_operand.hbm [shape: f32[1,2], index: 8, kind: output, shape index: {}]
  %s9 = sld [smem:[#allocation0]]
  $region42: #{my_model_forward.1} parent=0
    _
  %s11 = ssub.s32 1, %s9
  %s12 = scalar_select 0, %s11, %s9
  %v13 = vstv %s6
  %14 = vst [vmem:[#allocation2] sm:$0x1] %v13
  %v15 = vstv %s7
  %16 = vst [vmem:[#allocation3] sm:$0x1] %v15
  $region1: #{my_model_forward.1} parent=0
    #allocation4 [shape = 'u8[512]{0}', space=vmem, size = 0x400, scoped, tag = 'output window, operand 0, single buffered']
    #allocation5 [shape = 's32[1]{0}', space=sflag, size = 0x4, scoped, tag = 'scoped memory for my_model_forward.1']
    %17 = vsyncpa [#allocation5], 0
    // Predicated region
    $region2: #{my_model_forward.1} parent=1 // pred_check
      _
    $region3: #{my_model_forward.1} parent=1 // pred_check_branch
      %19 = sbr.rel (0) target = $region5
    $region4: #{my_model_forward.1} parent=1 // pred_region
      _
    $region5: #{my_model_forward.1} parent=1 // pred_fallthru
      _
    // Predicated region
    $region6: #{my_model_forward.1} parent=1 // pred_check
      _
    $region7: #{my_model_forward.1} parent=1 // pred_check_branch
      %21 = sbr.rel (0) target = $region9
    $region8: #{my_model_forward.1} parent=1 // pred_region
      _
    $region9: #{my_model_forward.1} parent=1 // pred_fallthru
      _
    // Predicated region
    $region10: #{my_model_forward.1} parent=1 // pred_check
      _
    $region11: #{my_model_forward.1} parent=1 // pred_check_branch
      %23 = sbr.rel (0) target = $region13
    $region12: #{my_model_forward.1} parent=1 // pred_region
      _
    $region13: #{my_model_forward.1} parent=1 // pred_fallthru
      _
    // Predicated region
    $region14: #{my_model_forward.1} parent=1 // pred_check
      _
    $region15: #{my_model_forward.1} parent=1 // pred_check_branch
      %25 = sbr.rel (0) target = $region17
    $region16: #{my_model_forward.1} parent=1 // pred_region
      _
    $region17: #{my_model_forward.1} parent=1 // pred_fallthru
      _
    // Predicated region
    $region18: #{my_model_forward.1} parent=1 // pred_check
      _
    $region19: #{my_model_forward.1} parent=1 // pred_check_branch
      %27 = sbr.rel (0) target = $region21
    $region20: #{my_model_forward.1} parent=1 // pred_region
      _
    $region21: #{my_model_forward.1} parent=1 // pred_fallthru
      _
    // Predicated region
    $region22: #{my_model_forward.1} parent=1 // pred_check
      _
    $region23: #{my_model_forward.1} parent=1 // pred_check_branch
      %29 = sbr.rel (0) target = $region25
    $region24: #{my_model_forward.1} parent=1 // pred_region
      _
    $region25: #{my_model_forward.1} parent=1 // pred_fallthru
      _
    // Predicated region
    $region26: #{my_model_forward.1} parent=1 // pred_check
      _
    $region27: #{my_model_forward.1} parent=1 // pred_check_branch
      %31 = sbr.rel (0) target = $region29
    $region28: #{my_model_forward.1} parent=1 // pred_region
      _
    $region29: #{my_model_forward.1} parent=1 // pred_fallthru
      _
    // Predicated region
    $region30: #{my_model_forward.1} parent=1 // pred_check
      _
    $region31: #{my_model_forward.1} parent=1 // pred_check_branch
      %33 = sbr.rel (0) target = $region33
    $region32: #{my_model_forward.1} parent=1 // pred_region
      _
    $region33: #{my_model_forward.1} parent=1 // pred_fallthru
      _
    %v34 = vld [vmem:[%s1] sm:$0xff]
    %v35 = vld [vmem:[%s0] sm:$0xff]
    %v36 = vld [vmem:[%s0 + $0x8] sm:$0xff]
    %v37 = vld [vmem:[%s0 + $0x10] sm:$0xff]
    %v38 = vld [vmem:[%s0 + $0x18] sm:$0xff]
    %v39 = vld [vmem:[%s0 + $0x20] sm:$0xff]
    %v40 = vld [vmem:[%s0 + $0x28] sm:$0xff]
    %v41 = vld [vmem:[%s0 + $0x30] sm:$0xff]
    %v42 = vld [vmem:[%s0 + $0x38] sm:$0xff]
    %v43 = vld [vmem:[%s0 + $0x40] sm:$0xff]
    %v44 = vld [vmem:[%s0 + $0x48] sm:$0xff]
    %v45 = vld [vmem:[%s0 + $0x50] sm:$0xff]
    %v46 = vld [vmem:[%s0 + $0x58] sm:$0xff]
    %v47 = vld [vmem:[%s0 + $0x60] sm:$0xff]
    %v48 = vld [vmem:[%s0 + $0x68] sm:$0xff]
    %v49 = vld [vmem:[%s0 + $0x70] sm:$0xff]
    %v50 = vld [vmem:[%s0 + $0x78] sm:$0xff]
    %v51 = vld [vmem:[%s0 + $0x80] sm:$0xf]
    %v52 = vld [vmem:[%s0 + $0x88] sm:$0xf]
    %v53 = vld [vmem:[%s0 + $0x90] sm:$0xf]
    %v54 = vld [vmem:[%s0 + $0x98] sm:$0xf]
    %v55 = vld [vmem:[%s2] sm:$0xff]
    %57 = vset.pattern.permute.xlu0 0
    %58 = vperm.xlu0 %57, %v55
    %v59 = vpop.permute.xlu0 %58
    %vm61 = vcmask 293888
    %v63 = vsel %vm61, %v34, 0
    %vm65 = vcmask 1043456
    %v67 = vsel %vm65, %v51, 0
    %v70 = vsel %vm65, %v52, 0
    %v73 = vsel %vm65, %v53, 0
    %v76 = vsel %vm65, %v54, 0
    %78 = vmatprep.subr.mxu0 %v36
    %79 = vmatpush1.msra.mxu0 %v35
    %80 = vmatprep.subr.mxu0 %v40
    %81 = vmatpush1.msra.mxu0 %v39
    %82 = vmatprep.subr.mxu0 %v44
    %83 = vmatpush1.msra.mxu0 %v43
    %84 = vmatprep.subr.mxu0 %v48
    %85 = vmatpush1.msra.mxu0 %v47
    %86 = vmatprep.subr.mxu0 %v70
    %87 = vmatpush1.msra.mxu0 %v67
    %88 = vmatprep.subr.mxu0 0.0
    %89 = vmatpush1.msra.mxu0 0.0
    %90 = vmatprep.subr.mxu0 0.0
    %91 = vmatpush1.msra.mxu0 0.0
    %92 = vmatprep.subr.mxu0 0.0
    %93 = vmatpush1.msra.mxu0 0.0
    %94 = vmatprep.subr.mxu0 0.0
    %95 = vmatpush1.msra.mxu0 0.0
    %96 = vmatprep.subr.mxu0 0.0
    %97 = vmatpush1.msra.mxu0 0.0
    %98 = vmatprep.subr.mxu0 0.0
    %99 = vmatpush1.msra.mxu0 0.0
    %100 = vmatprep.subr.mxu0 0.0
    %101 = vmatpush1.msra.mxu0 0.0
    %102 = vmatprep.subr.mxu0 0.0
    %103 = vmatpush1.msra.mxu0 0.0
    %104 = vmatprep.subr.mxu0 0.0
    %105 = vmatpush1.msra.mxu0 0.0
    %106 = vmatprep.subr.mxu0 0.0
    %107 = vmatpush1.msra.mxu0 0.0
    %108 = vmatprep.subr.mxu0 0.0
    %109 = vmatpush1.msra.mxu0 0.0
    %110 = vmatprep.subr.mxu0 0.0
    %111 = vmatpush1.msra.mxu0 0.0
    %112 = vmatprep.subr.mxu0 0.0
    %113 = vmatpush1.msra.mxu0 0.0
    %114 = vmatprep.subr.mxu0 0.0
    %115 = vmatpush1.msra.mxu0 0.0
    %116 = vmatprep.subr.mxu0 0.0
    %117 = vmatpush1.msra.mxu0 0.0
    %118 = vmatprep.subr.mxu0 0.0
    %119 = vmatpush1.msra.mxu0 0.0
    %120 = vmatprep.subr.mxu0 0.0
    %121 = vmatpush1.msra.mxu0 0.0
    %122 = vmatprep.subr.mxu0 0.0
    %123 = vmatpush1.msra.mxu0 0.0
    %124 = vmatprep.subr.mxu0 0.0
    %125 = vmatpush1.msra.mxu0 0.0
    %126 = vmatprep.subr.mxu0 0.0
    %127 = vmatpush1.msra.mxu0 0.0
    %128 = vmatprep.subr.mxu0 0.0
    %129 = vmatpush1.msra.mxu0 0.0
    %130 = vmatprep.subr.mxu0 0.0
    %131 = vmatpush1.msra.mxu0 0.0
    %132 = vmatprep.subr.mxu0 0.0
    %133 = vmatpush1.msra.mxu0 0.0
    %134 = vmatprep.subr.mxu0 0.0
    %135 = vmatpush1.msra.mxu0 0.0
    %136 = vmatprep.subr.mxu0 0.0
    %137 = vmatpush1.msra.mxu0 0.0
    %138 = vmatprep.subr.mxu0 0.0
    %139 = vmatpush1.msra.mxu0 0.0
    %140 = vmatprep.subr.mxu0 0.0
    %141 = vmatpush1.msra.mxu0 0.0
    %142 = vmatprep.mubr.f32.mxu0 0.0
    %143 = vmatmul.mubr.f32.gmra.mrb[0].mxu0 %v63
    %v144 = vpop.f32.mrb[0].mxu0
    %v145 = vadd.f32 %v59, %v144
    %v146 = vpop.f32.mrb[0].mxu0
    %v147 = vadd.f32 %v59, %v146
    %148 = vdwg.mxu0
    %149 = vmatprep.subr.mxu0 %v38
    %150 = vmatpush1.msra.mxu0 %v37
    %151 = vmatprep.subr.mxu0 %v42
    %152 = vmatpush1.msra.mxu0 %v41
    %153 = vmatprep.subr.mxu0 %v46
    %154 = vmatpush1.msra.mxu0 %v45
    %155 = vmatprep.subr.mxu0 %v50
    %156 = vmatpush1.msra.mxu0 %v49
    %157 = vmatprep.subr.mxu0 %v76
    %158 = vmatpush1.msra.mxu0 %v73
    %159 = vmatprep.subr.mxu0 0.0
    %160 = vmatpush1.msra.mxu0 0.0
    %161 = vmatprep.subr.mxu0 0.0
    %162 = vmatpush1.msra.mxu0 0.0
    %163 = vmatprep.subr.mxu0 0.0
    %164 = vmatpush1.msra.mxu0 0.0
    %165 = vmatprep.subr.mxu0 0.0
    %166 = vmatpush1.msra.mxu0 0.0
    %167 = vmatprep.subr.mxu0 0.0
    %168 = vmatpush1.msra.mxu0 0.0
    %169 = vmatprep.subr.mxu0 0.0
    %170 = vmatpush1.msra.mxu0 0.0
    %171 = vmatprep.subr.mxu0 0.0
    %172 = vmatpush1.msra.mxu0 0.0
    %173 = vmatprep.subr.mxu0 0.0
    %174 = vmatpush1.msra.mxu0 0.0
    %175 = vmatprep.subr.mxu0 0.0
    %176 = vmatpush1.msra.mxu0 0.0
    %177 = vmatprep.subr.mxu0 0.0
    %178 = vmatpush1.msra.mxu0 0.0
    %179 = vmatprep.subr.mxu0 0.0
    %180 = vmatpush1.msra.mxu0 0.0
    %181 = vmatprep.subr.mxu0 0.0
    %182 = vmatpush1.msra.mxu0 0.0
    %183 = vmatprep.subr.mxu0 0.0
    %184 = vmatpush1.msra.mxu0 0.0
    %185 = vmatprep.subr.mxu0 0.0
    %186 = vmatpush1.msra.mxu0 0.0
    %187 = vmatprep.subr.mxu0 0.0
    %188 = vmatpush1.msra.mxu0 0.0
    %189 = vmatprep.subr.mxu0 0.0
    %190 = vmatpush1.msra.mxu0 0.0
    %191 = vmatprep.subr.mxu0 0.0
    %192 = vmatpush1.msra.mxu0 0.0
    %193 = vmatprep.subr.mxu0 0.0
    %194 = vmatpush1.msra.mxu0 0.0
    %195 = vmatprep.subr.mxu0 0.0
    %196 = vmatpush1.msra.mxu0 0.0
    %197 = vmatprep.subr.mxu0 0.0
    %198 = vmatpush1.msra.mxu0 0.0
    %199 = vmatprep.subr.mxu0 0.0
    %200 = vmatpush1.msra.mxu0 0.0
    %201 = vmatprep.subr.mxu0 0.0
    %202 = vmatpush1.msra.mxu0 0.0
    %203 = vmatprep.subr.mxu0 0.0
    %204 = vmatpush1.msra.mxu0 0.0
    %205 = vmatprep.subr.mxu0 0.0
    %206 = vmatpush1.msra.mxu0 0.0
    %207 = vmatprep.subr.mxu0 0.0
    %208 = vmatpush1.msra.mxu0 0.0
    %209 = vmatprep.subr.mxu0 0.0
    %210 = vmatpush1.msra.mxu0 0.0
    %211 = vmatprep.subr.mxu0 0.0
    %212 = vmatpush1.msra.mxu0 0.0
    %213 = vmatprep.mubr.f32.mxu0 0.0
    %214 = vmatmul.mubr.f32.gmra.mrb[0].mxu0 %v63
    %v215 = vpop.f32.mrb[0].mxu0
    %v216 = vadd.f32 %v59, %v215
    %v217 = vpop.f32.mrb[0].mxu0
    %v218 = vadd.f32 %v59, %v217
    %219 = vdwg.mxu0
    %v220 = vmax.f32 %v145, 0.0
    %v221 = vmax.f32 %v147, 0.0
    %v222 = vmax.f32 %v216, 0.0
    %v223 = vmax.f32 %v218, 0.0
    %v224 = vld [vmem:[%s3] sm:$0xff]
    %v225 = vld [vmem:[%s3 + $0x8] sm:$0xff]
    %v226 = vld [vmem:[%s3 + $0x10] sm:$0xff]
    %v227 = vld [vmem:[%s3 + $0x18] sm:$0xff]
    %v228 = vld [vmem:[%s3 + $0x20] sm:$0xff]
    %v229 = vld [vmem:[%s3 + $0x28] sm:$0xff]
    %v230 = vld [vmem:[%s3 + $0x30] sm:$0xff]
    %v231 = vld [vmem:[%s3 + $0x38] sm:$0xff]
    %v232 = vld [vmem:[%s3 + $0x40] sm:$0xff]
    %v233 = vld [vmem:[%s3 + $0x48] sm:$0xff]
    %v234 = vld [vmem:[%s3 + $0x50] sm:$0xff]
    %v235 = vld [vmem:[%s3 + $0x58] sm:$0xff]
    %v236 = vld [vmem:[%s3 + $0x60] sm:$0xff]
    %v237 = vld [vmem:[%s3 + $0x68] sm:$0xff]
    %v238 = vld [vmem:[%s3 + $0x70] sm:$0xff]
    %v239 = vld [vmem:[%s3 + $0x78] sm:$0xff]
    %v240 = vld [vmem:[%s3 + $0x80] sm:$0xff]
    %v241 = vld [vmem:[%s3 + $0x88] sm:$0xff]
    %v242 = vld [vmem:[%s3 + $0x90] sm:$0xff]
    %v243 = vld [vmem:[%s3 + $0x98] sm:$0xff]
    %v244 = vld [vmem:[%s3 + $0xa0] sm:$0xff]
    %v245 = vld [vmem:[%s3 + $0xa8] sm:$0xff]
    %v246 = vld [vmem:[%s3 + $0xb0] sm:$0xff]
    %v247 = vld [vmem:[%s3 + $0xb8] sm:$0xff]
    %v248 = vld [vmem:[%s3 + $0xc0] sm:$0xff]
    %v249 = vld [vmem:[%s3 + $0xc8] sm:$0xff]
    %v250 = vld [vmem:[%s3 + $0xd0] sm:$0xff]
    %v251 = vld [vmem:[%s3 + $0xd8] sm:$0xff]
    %v252 = vld [vmem:[%s3 + $0xe0] sm:$0xff]
    %v253 = vld [vmem:[%s3 + $0xe8] sm:$0xff]
    %v254 = vld [vmem:[%s3 + $0xf0] sm:$0xff]
    %v255 = vld [vmem:[%s3 + $0xf8] sm:$0xff]
    %v256 = vld [vmem:[%s3 + $0x100] sm:$0xff]
    %v257 = vld [vmem:[%s3 + $0x108] sm:$0xff]
    %v258 = vld [vmem:[%s3 + $0x110] sm:$0xff]
    %v259 = vld [vmem:[%s3 + $0x118] sm:$0xff]
    %v260 = vld [vmem:[%s3 + $0x120] sm:$0xff]
    %v261 = vld [vmem:[%s3 + $0x128] sm:$0xff]
    %v262 = vld [vmem:[%s3 + $0x130] sm:$0xff]
    %v263 = vld [vmem:[%s3 + $0x138] sm:$0xff]
    %v264 = vld [vmem:[%s3 + $0x140] sm:$0xff]
    %v265 = vld [vmem:[%s3 + $0x148] sm:$0xff]
    %v266 = vld [vmem:[%s3 + $0x150] sm:$0xff]
    %v267 = vld [vmem:[%s3 + $0x158] sm:$0xff]
    %v268 = vld [vmem:[%s3 + $0x160] sm:$0xff]
    %v269 = vld [vmem:[%s3 + $0x168] sm:$0xff]
    %v270 = vld [vmem:[%s3 + $0x170] sm:$0xff]
    %v271 = vld [vmem:[%s3 + $0x178] sm:$0xff]
    %v272 = vld [vmem:[%s3 + $0x180] sm:$0xff]
    %v273 = vld [vmem:[%s3 + $0x188] sm:$0xff]
    %v274 = vld [vmem:[%s3 + $0x190] sm:$0xff]
    %v275 = vld [vmem:[%s3 + $0x198] sm:$0xff]
    %v276 = vld [vmem:[%s3 + $0x1a0] sm:$0xff]
    %v277 = vld [vmem:[%s3 + $0x1a8] sm:$0xff]
    %v278 = vld [vmem:[%s3 + $0x1b0] sm:$0xff]
    %v279 = vld [vmem:[%s3 + $0x1b8] sm:$0xff]
    %v280 = vld [vmem:[%s3 + $0x1c0] sm:$0xff]
    %v281 = vld [vmem:[%s3 + $0x1c8] sm:$0xff]
    %v282 = vld [vmem:[%s3 + $0x1d0] sm:$0xff]
    %v283 = vld [vmem:[%s3 + $0x1d8] sm:$0xff]
    %v284 = vld [vmem:[%s3 + $0x1e0] sm:$0xff]
    %v285 = vld [vmem:[%s3 + $0x1e8] sm:$0xff]
    %v286 = vld [vmem:[%s3 + $0x1f0] sm:$0xff]
    %v287 = vld [vmem:[%s3 + $0x1f8] sm:$0xff]
    %288 = vmatprep.subr.mxu0 0.0
    %289 = vmatpush1.msra.mxu0 %v224
    %290 = vmatprep.subr.mxu0 0.0
    %291 = vmatpush1.msra.mxu0 %v225
    %292 = vmatprep.subr.mxu0 0.0
    %293 = vmatpush1.msra.mxu0 %v226
    %294 = vmatprep.subr.mxu0 0.0
    %295 = vmatpush1.msra.mxu0 %v227
    %296 = vmatprep.subr.mxu0 0.0
    %297 = vmatpush1.msra.mxu0 %v228
    %298 = vmatprep.subr.mxu0 0.0
    %299 = vmatpush1.msra.mxu0 %v229
    %300 = vmatprep.subr.mxu0 0.0
    %301 = vmatpush1.msra.mxu0 %v230
    %302 = vmatprep.subr.mxu0 0.0
    %303 = vmatpush1.msra.mxu0 %v231
    %304 = vmatprep.subr.mxu0 0.0
    %305 = vmatpush1.msra.mxu0 %v232
    %306 = vmatprep.subr.mxu0 0.0
    %307 = vmatpush1.msra.mxu0 %v233
    %308 = vmatprep.subr.mxu0 0.0
    %309 = vmatpush1.msra.mxu0 %v234
    %310 = vmatprep.subr.mxu0 0.0
    %311 = vmatpush1.msra.mxu0 %v235
    %312 = vmatprep.subr.mxu0 0.0
    %313 = vmatpush1.msra.mxu0 %v236
    %314 = vmatprep.subr.mxu0 0.0
    %315 = vmatpush1.msra.mxu0 %v237
    %316 = vmatprep.subr.mxu0 0.0
    %317 = vmatpush1.msra.mxu0 %v238
    %318 = vmatprep.subr.mxu0 0.0
    %319 = vmatpush1.msra.mxu0 %v239
    %320 = vmatprep.subr.mxu0 0.0
    %321 = vmatpush1.msra.mxu0 %v240
    %322 = vmatprep.subr.mxu0 0.0
    %323 = vmatpush1.msra.mxu0 %v241
    %324 = vmatprep.subr.mxu0 0.0
    %325 = vmatpush1.msra.mxu0 %v242
    %326 = vmatprep.subr.mxu0 0.0
    %327 = vmatpush1.msra.mxu0 %v243
    %328 = vmatprep.subr.mxu0 0.0
    %329 = vmatpush1.msra.mxu0 %v244
    %330 = vmatprep.subr.mxu0 0.0
    %331 = vmatpush1.msra.mxu0 %v245
    %332 = vmatprep.subr.mxu0 0.0
    %333 = vmatpush1.msra.mxu0 %v246
    %334 = vmatprep.subr.mxu0 0.0
    %335 = vmatpush1.msra.mxu0 %v247
    %336 = vmatprep.subr.mxu0 0.0
    %337 = vmatpush1.msra.mxu0 %v248
    %338 = vmatprep.subr.mxu0 0.0
    %339 = vmatpush1.msra.mxu0 %v249
    %340 = vmatprep.subr.mxu0 0.0
    %341 = vmatpush1.msra.mxu0 %v250
    %342 = vmatprep.subr.mxu0 0.0
    %343 = vmatpush1.msra.mxu0 %v251
    %344 = vmatprep.subr.mxu0 0.0
    %345 = vmatpush1.msra.mxu0 %v252
    %346 = vmatprep.subr.mxu0 0.0
    %347 = vmatpush1.msra.mxu0 %v253
    %348 = vmatprep.subr.mxu0 0.0
    %349 = vmatpush1.msra.mxu0 %v254
    %350 = vmatprep.subr.mxu0 0.0
    %351 = vmatpush1.msra.mxu0 %v255
    %352 = vmatprep.mubr.f32.mxu0 %v221
    %353 = vmatmul.mubr.f32.gmra.mrb[0].mxu0 %v220
    %v354 = vpop.f32.mrb[0].mxu0
    %v355 = vadd.f32 0.0, %v354
    %v356 = vpop.f32.mrb[0].mxu0
    %357 = vdwg.mxu0
    %358 = vmatprep.subr.mxu0 0.0
    %359 = vmatpush1.msra.mxu0 %v256
    %360 = vmatprep.subr.mxu0 0.0
    %361 = vmatpush1.msra.mxu0 %v257
    %362 = vmatprep.subr.mxu0 0.0
    %363 = vmatpush1.msra.mxu0 %v258
    %364 = vmatprep.subr.mxu0 0.0
    %365 = vmatpush1.msra.mxu0 %v259
    %366 = vmatprep.subr.mxu0 0.0
    %367 = vmatpush1.msra.mxu0 %v260
    %368 = vmatprep.subr.mxu0 0.0
    %369 = vmatpush1.msra.mxu0 %v261
    %370 = vmatprep.subr.mxu0 0.0
    %371 = vmatpush1.msra.mxu0 %v262
    %372 = vmatprep.subr.mxu0 0.0
    %373 = vmatpush1.msra.mxu0 %v263
    %374 = vmatprep.subr.mxu0 0.0
    %375 = vmatpush1.msra.mxu0 %v264
    %376 = vmatprep.subr.mxu0 0.0
    %377 = vmatpush1.msra.mxu0 %v265
    %378 = vmatprep.subr.mxu0 0.0
    %379 = vmatpush1.msra.mxu0 %v266
    %380 = vmatprep.subr.mxu0 0.0
    %381 = vmatpush1.msra.mxu0 %v267
    %382 = vmatprep.subr.mxu0 0.0
    %383 = vmatpush1.msra.mxu0 %v268
    %384 = vmatprep.subr.mxu0 0.0
    %385 = vmatpush1.msra.mxu0 %v269
    %386 = vmatprep.subr.mxu0 0.0
    %387 = vmatpush1.msra.mxu0 %v270
    %388 = vmatprep.subr.mxu0 0.0
    %389 = vmatpush1.msra.mxu0 %v271
    %390 = vmatprep.subr.mxu0 0.0
    %391 = vmatpush1.msra.mxu0 %v272
    %392 = vmatprep.subr.mxu0 0.0
    %393 = vmatpush1.msra.mxu0 %v273
    %394 = vmatprep.subr.mxu0 0.0
    %395 = vmatpush1.msra.mxu0 %v274
    %396 = vmatprep.subr.mxu0 0.0
    %397 = vmatpush1.msra.mxu0 %v275
    %398 = vmatprep.subr.mxu0 0.0
    %399 = vmatpush1.msra.mxu0 %v276
    %400 = vmatprep.subr.mxu0 0.0
    %401 = vmatpush1.msra.mxu0 %v277
    %402 = vmatprep.subr.mxu0 0.0
    %403 = vmatpush1.msra.mxu0 %v278
    %404 = vmatprep.subr.mxu0 0.0
    %405 = vmatpush1.msra.mxu0 %v279
    %406 = vmatprep.subr.mxu0 0.0
    %407 = vmatpush1.msra.mxu0 %v280
    %408 = vmatprep.subr.mxu0 0.0
    %409 = vmatpush1.msra.mxu0 %v281
    %410 = vmatprep.subr.mxu0 0.0
    %411 = vmatpush1.msra.mxu0 %v282
    %412 = vmatprep.subr.mxu0 0.0
    %413 = vmatpush1.msra.mxu0 %v283
    %414 = vmatprep.subr.mxu0 0.0
    %415 = vmatpush1.msra.mxu0 %v284
    %416 = vmatprep.subr.mxu0 0.0
    %417 = vmatpush1.msra.mxu0 %v285
    %418 = vmatprep.subr.mxu0 0.0
    %419 = vmatpush1.msra.mxu0 %v286
    %420 = vmatprep.subr.mxu0 0.0
    %421 = vmatpush1.msra.mxu0 %v287
    %422 = vmatprep.mubr.f32.mxu0 %v223
    %423 = vmatmul.mubr.f32.gmra.mrb[0].mxu0 %v222
    %v424 = vpop.f32.mrb[0].mxu0
    %v425 = vadd.f32 %v355, %v424
    %v426 = vpop.f32.mrb[0].mxu0
    %427 = vdwg.mxu0
    %v428 = vld [vmem:[%s5] sm:$0x1]
    %v429 = vld [vmem:[#allocation2] sm:$0x1]
    %v430 = vld [vmem:[%s4] sm:$0x1]
    %432 = vset.pattern.permute.xlu0 0
    %433 = vperm.xlu0 %432, %v429
    %v434 = vpop.permute.xlu0 %433
    %v436 = vlaneseq
    %v437 = vshrl.u32 %v436, 7
    %v438 = vsub.s32 0, %v437
    %v439 = vrot.slane %v434, %v438
    %v440 = vmul.f32 %v439, %v430
    %vm441 = vcmask 64512
    %v443 = vsel %vm441, %v428, 0
    %445 = vmatprep.subr.mxu0 0.0
    %446 = vmatpush1.msra.mxu0 %v425
    %447 = vmatprep.subr.mxu0 0.0
    %448 = vmatpush1.msra.mxu0 0.0
    %449 = vmatprep.subr.mxu0 0.0
    %450 = vmatpush1.msra.mxu0 0.0
    %451 = vmatprep.subr.mxu0 0.0
    %452 = vmatpush1.msra.mxu0 0.0
    %453 = vmatprep.subr.mxu0 0.0
    %454 = vmatpush1.msra.mxu0 0.0
    %455 = vmatprep.subr.mxu0 0.0
    %456 = vmatpush1.msra.mxu0 0.0
    %457 = vmatprep.subr.mxu0 0.0
    %458 = vmatpush1.msra.mxu0 0.0
    %459 = vmatprep.subr.mxu0 0.0
    %460 = vmatpush1.msra.mxu0 0.0
    %461 = vmatprep.subr.mxu0 0.0
    %462 = vmatpush1.msra.mxu0 0.0
    %463 = vmatprep.subr.mxu0 0.0
    %464 = vmatpush1.msra.mxu0 0.0
    %465 = vmatprep.subr.mxu0 0.0
    %466 = vmatpush1.msra.mxu0 0.0
    %467 = vmatprep.subr.mxu0 0.0
    %468 = vmatpush1.msra.mxu0 0.0
    %469 = vmatprep.subr.mxu0 0.0
    %470 = vmatpush1.msra.mxu0 0.0
    %471 = vmatprep.subr.mxu0 0.0
    %472 = vmatpush1.msra.mxu0 0.0
    %473 = vmatprep.subr.mxu0 0.0
    %474 = vmatpush1.msra.mxu0 0.0
    %475 = vmatprep.subr.mxu0 0.0
    %476 = vmatpush1.msra.mxu0 0.0
    %477 = vmatprep.subr.mxu0 0.0
    %478 = vmatpush1.msra.mxu0 0.0
    %479 = vmatprep.subr.mxu0 0.0
    %480 = vmatpush1.msra.mxu0 0.0
    %481 = vmatprep.subr.mxu0 0.0
    %482 = vmatpush1.msra.mxu0 0.0
    %483 = vmatprep.subr.mxu0 0.0
    %484 = vmatpush1.msra.mxu0 0.0
    %485 = vmatprep.subr.mxu0 0.0
    %486 = vmatpush1.msra.mxu0 0.0
    %487 = vmatprep.subr.mxu0 0.0
    %488 = vmatpush1.msra.mxu0 0.0
    %489 = vmatprep.subr.mxu0 0.0
    %490 = vmatpush1.msra.mxu0 0.0
    %491 = vmatprep.subr.mxu0 0.0
    %492 = vmatpush1.msra.mxu0 0.0
    %493 = vmatprep.subr.mxu0 0.0
    %494 = vmatpush1.msra.mxu0 0.0
    %495 = vmatprep.subr.mxu0 0.0
    %496 = vmatpush1.msra.mxu0 0.0
    %497 = vmatprep.subr.mxu0 0.0
    %498 = vmatpush1.msra.mxu0 0.0
    %499 = vmatprep.subr.mxu0 0.0
    %500 = vmatpush1.msra.mxu0 0.0
    %501 = vmatprep.subr.mxu0 0.0
    %502 = vmatpush1.msra.mxu0 0.0
    %503 = vmatprep.subr.mxu0 0.0
    %504 = vmatpush1.msra.mxu0 0.0
    %505 = vmatprep.subr.mxu0 0.0
    %506 = vmatpush1.msra.mxu0 0.0
    %507 = vmatprep.subr.mxu0 0.0
    %508 = vmatpush1.msra.mxu0 0.0
    %509 = vmatprep.mubr.f32.mxu0 0.0
    %510 = vmatmul.mubr.f32.gmra.mrb[0].mxu0 %v443
    %v511 = vpop.f32.mrb[0].mxu0
    %v512 = vadd.f32 %v440, %v511
    %v513 = vpop.f32.mrb[0].mxu0
    %514 = vdwg.mxu0
    %v515 = vld [vmem:[#allocation3] sm:$0x1]
    %517 = vset.pattern.permute.xlu0 0
    %518 = vperm.xlu0 %517, %v515
    %v519 = vpop.permute.xlu0 %518
    %v521 = vlaneseq
    %v522 = vshrl.u32 %v521, 7
    %v523 = vsub.s32 0, %v522
    %v524 = vrot.slane %v519, %v523
    %v525 = vadd.f32 %v512, %v524
    %vm526 = vcmask 8192
    %527 = vst.msk [vmem:[#allocation4] sm:$0x1] %vm526, %v525
    // Predicated region
    $region34: #{my_model_forward.1} parent=1 // pred_check
      _
    $region35: #{my_model_forward.1} parent=1 // pred_check_branch
      %529 = sbr.rel (0) target = $region37
    $region36: #{my_model_forward.1} parent=1 // pred_region
      %s531 = ssub.s32 16, 16
      %532 = vsyncadd [#allocation5], %s531
      %s534 = sshll.u32 [#allocation4], 4
      %s535 = int_to_ptr.vmem [resolvable:$true] %s534
      %537 = dma.vmem_to_hbm [thread:$0]  %s535, 16, %s8, [#allocation5]
    $region37: #{my_model_forward.1} parent=1 // pred_fallthru
      _
    // Predicated region
    $region38: #{my_model_forward.1} parent=1 // pred_check
      _
    $region39: #{my_model_forward.1} parent=1 // pred_check_branch
      %539 = sbr.rel (0) target = $region41
    $region40: #{my_model_forward.1} parent=1 // pred_region
      %540 = dma.done [#allocation5], 16
    $region41: #{my_model_forward.1} parent=1 // pred_fallthru
      _
    %541 = vsyncpa [#allocation5], 1

</llo_original>
